<compile_context>
chip_gen: v7x
topology: tpu7x:2x2x1
jax: 0.10.0
libtpu: 0.0.40
codegen_flags: <defaults>
</compile_context>

<pallas_src>
import jax
import jax.numpy as jnp
from jax.experimental import pallas as pl
from jax.experimental.pallas import tpu as pltpu

input_size = 4
hidden_size = 10
num_classes = 2


def _round_up(n, m):
    return ((n + m - 1) // m) * m


def mlp_kernel(xT_ref, w1_ref, b1_ref, w2_ref, b2_ref, oT_ref):
    # Per-block shapes:
    #   xT_ref : [in_dim, TB]      batch on lanes -> lane-dense loads
    #   w1_ref : [hid, in_dim]     (PyTorch fc1.weight layout)
    #   b1_ref : [hid, 1]
    #   w2_ref : [cls, hid]        (PyTorch fc2.weight layout)
    #   b2_ref : [cls, 1]
    #   oT_ref : [cls, TB]         batch on lanes -> lane-dense store
    hid, in_dim = w1_ref.shape
    xT = xT_ref[...]
    w1 = w1_ref[...]
    w2 = w2_ref[...]

    # fc1: h^T = W1 @ x^T + b1, unrolled as `in_dim` broadcast FMAs on the VPU.
    # (K=4 is far too small to pay MXU push + result-FIFO pop latency.)
    h = b1_ref[...]                                     # [hid, 1]
    for k in range(in_dim):
        h = h + w1[:, k:k + 1] * xT[k:k + 1, :]         # [hid,1]*[1,TB] -> [hid,TB]

    # Sigmoid on the EUP (logistic), keeping vector-ALU slots free.
    h = jax.nn.sigmoid(h)

    # fc2: out^T = W2 @ h^T + b2, unrolled as `hid` broadcast FMAs on the VPU.
    out = b2_ref[...]                                   # [cls, 1]
    for j in range(hid):
        out = out + w2[:, j:j + 1] * h[j:j + 1, :]      # [cls,1]*[1,TB] -> [cls,TB]

    oT_ref[...] = out.astype(oT_ref.dtype)


def net_forward(x, w1, b1, w2, b2, *, block_b=2048):
    """Forward pass of Net.

    x : [B, input_size] float32
    w1: [hidden_size, input_size]   (PyTorch fc1.weight layout)
    b1: [hidden_size]
    w2: [num_classes, hidden_size]  (PyTorch fc2.weight layout)
    b2: [num_classes]
    returns [B, num_classes] float32
    """
    B, F = x.shape
    assert F == input_size

    # Batch tile: multiple of 128 (lane width), no bigger than needed.
    # Per-buffer VMEM at TB=2048 is < 50 KiB, comfortably inside the scoped
    # limit on every generation (incl. v7x's 64 MiB physical VMEM).
    tb_cap = max(128, (block_b // 128) * 128)
    TB = min(tb_cap, _round_up(B, 128))
    Bp = _round_up(B, TB)

    # Transposed, zero-padded input: [input_size, B_padded].
    xT = jnp.transpose(x)
    if Bp != B:
        xT = jnp.pad(xT, ((0, 0), (0, Bp - B)))

    outT = pl.pallas_call(
        mlp_kernel,
        out_shape=jax.ShapeDtypeStruct((num_classes, Bp), jnp.float32),
        grid=(Bp // TB,),
        in_specs=[
            pl.BlockSpec((input_size, TB), lambda i: (0, i)),          # x^T tile
            pl.BlockSpec((hidden_size, input_size), lambda i: (0, 0)),  # w1 resident
            pl.BlockSpec((hidden_size, 1), lambda i: (0, 0)),           # b1 resident
            pl.BlockSpec((num_classes, hidden_size), lambda i: (0, 0)),  # w2 resident
            pl.BlockSpec((num_classes, 1), lambda i: (0, 0)),           # b2 resident
        ],
        out_specs=pl.BlockSpec((num_classes, TB), lambda i: (0, i)),
        compiler_params=pltpu.CompilerParams(
            dimension_semantics=("parallel",),          # shard batch tiles over TCs (v7x)
            vmem_limit_bytes=32 * 1024 * 1024,
        ),
    )(xT, w1, b1.reshape(hidden_size, 1), w2, b2.reshape(num_classes, 1))

    return jnp.transpose(outT[:, :B])


def init_params(key):
    # Deterministic init mimicking nn.Linear's uniform(-1/sqrt(fan_in), 1/sqrt(fan_in)),
    # in PyTorch's native [out_features, in_features] weight layout.
    k1, k2, k3, k4 = jax.random.split(key, 4)
    bound1 = 1.0 / jnp.sqrt(jnp.float32(input_size))
    bound2 = 1.0 / jnp.sqrt(jnp.float32(hidden_size))
    w1 = jax.random.uniform(k1, (hidden_size, input_size), jnp.float32, -bound1, bound1)
    b1 = jax.random.uniform(k2, (hidden_size,), jnp.float32, -bound1, bound1)
    w2 = jax.random.uniform(k3, (num_classes, hidden_size), jnp.float32, -bound2, bound2)
    b2 = jax.random.uniform(k4, (num_classes,), jnp.float32, -bound2, bound2)
    return w1, b1, w2, b2


if __name__ == "__main__":
    key = jax.random.PRNGKey(0)
    k_x, k_p = jax.random.split(key)
    w1, b1, w2, b2 = init_params(k_p)

    def ref_forward(xx):
        h = jax.nn.sigmoid(
            jnp.dot(xx, w1.T, precision=jax.lax.Precision.HIGHEST) + b1)
        return jnp.dot(h, w2.T, precision=jax.lax.Precision.HIGHEST) + b2

    # Small shape consistent with the module: batch=8, input_size=4.
    B = 8
    x = jax.random.normal(k_x, (B, input_size), dtype=jnp.float32)
    out = net_forward(x, w1, b1, w2, b2)
    jax.block_until_ready(out)
    assert out.shape == (B, num_classes)
    assert jnp.allclose(out, ref_forward(x), atol=1e-4, rtol=1e-4)

    # Also exercise the multi-tile grid + batch-padding path.
    B2 = 300
    x2 = jax.random.normal(k_x, (B2, input_size), dtype=jnp.float32)
    out2 = net_forward(x2, w1, b1, w2, b2, block_b=128)
    jax.block_until_ready(out2)
    assert out2.shape == (B2, num_classes)
    assert jnp.allclose(out2, ref_forward(x2), atol=1e-4, rtol=1e-4)

    print("KERNEL_OK")
</pallas_src>

<mosaic_0001>
module attributes {stable_mosaic.version = 11 : i64} {
  func.func @mlp_kernel(%arg0: i32, %arg1: memref<4x128xf32, #tpu.memory_space<vmem>>, %arg2: memref<10x4xf32, #tpu.memory_space<vmem>>, %arg3: memref<10x1xf32, #tpu.memory_space<vmem>>, %arg4: memref<2x10xf32, #tpu.memory_space<vmem>>, %arg5: memref<2x1xf32, #tpu.memory_space<vmem>>, %arg6: memref<2x128xf32, #tpu.memory_space<vmem>>) attributes {dimension_semantics = [#tpu.dimension_semantics<parallel>], iteration_bounds = array<i64: 1>, scalar_prefetch = 0 : i64, scratch_operands = 0 : i64, tpu.core_type = #tpu.core_type<tc>, window_params = [{transform_indices = @transform_0, window_bounds = array<i64: 4, 128>}, {pipeline_mode = #tpu.pipeline_mode<synchronous>, transform_indices = @transform_1, window_bounds = array<i64: 10, 4>}, {pipeline_mode = #tpu.pipeline_mode<synchronous>, transform_indices = @transform_2, window_bounds = array<i64: 10, 1>}, {pipeline_mode = #tpu.pipeline_mode<synchronous>, transform_indices = @transform_3, window_bounds = array<i64: 2, 10>}, {pipeline_mode = #tpu.pipeline_mode<synchronous>, transform_indices = @transform_4, window_bounds = array<i64: 2, 1>}, {transform_indices = @transform_5, window_bounds = array<i64: 2, 128>}]} {
    %c0 = arith.constant 0 : index
    %c0_0 = arith.constant 0 : index
    %0 = vector.load %arg1[%c0, %c0_0] : memref<4x128xf32, #tpu.memory_space<vmem>>, vector<4x128xf32>
    %c0_1 = arith.constant 0 : index
    %c0_2 = arith.constant 0 : index
    %1 = vector.load %arg2[%c0_1, %c0_2] : memref<10x4xf32, #tpu.memory_space<vmem>>, vector<10x4xf32>
    %c0_3 = arith.constant 0 : index
    %c0_4 = arith.constant 0 : index
    %2 = vector.load %arg4[%c0_3, %c0_4] : memref<2x10xf32, #tpu.memory_space<vmem>>, vector<2x10xf32>
    %c0_5 = arith.constant 0 : index
    %c0_6 = arith.constant 0 : index
    %3 = vector.load %arg3[%c0_5, %c0_6] : memref<10x1xf32, #tpu.memory_space<vmem>>, vector<10x1xf32>
    %4 = vector.extract_strided_slice %1 {offsets = [0, 0], sizes = [10, 1], strides = [1, 1]} : vector<10x4xf32> to vector<10x1xf32>
    %5 = vector.extract_strided_slice %0 {offsets = [0, 0], sizes = [1, 128], strides = [1, 1]} : vector<4x128xf32> to vector<1x128xf32>
    %6 = vector.broadcast %4 : vector<10x1xf32> to vector<10x128xf32>
    %7 = vector.broadcast %5 : vector<1x128xf32> to vector<10x128xf32>
    %8 = arith.mulf %6, %7 : vector<10x128xf32>
    %9 = vector.broadcast %3 : vector<10x1xf32> to vector<10x128xf32>
    %10 = arith.addf %9, %8 : vector<10x128xf32>
    %11 = vector.extract_strided_slice %1 {offsets = [0, 1], sizes = [10, 1], strides = [1, 1]} : vector<10x4xf32> to vector<10x1xf32>
    %12 = vector.extract_strided_slice %0 {offsets = [1, 0], sizes = [1, 128], strides = [1, 1]} : vector<4x128xf32> to vector<1x128xf32>
    %13 = vector.broadcast %11 : vector<10x1xf32> to vector<10x128xf32>
    %14 = vector.broadcast %12 : vector<1x128xf32> to vector<10x128xf32>
    %15 = arith.mulf %13, %14 : vector<10x128xf32>
    %16 = arith.addf %10, %15 : vector<10x128xf32>
    %17 = vector.extract_strided_slice %1 {offsets = [0, 2], sizes = [10, 1], strides = [1, 1]} : vector<10x4xf32> to vector<10x1xf32>
    %18 = vector.extract_strided_slice %0 {offsets = [2, 0], sizes = [1, 128], strides = [1, 1]} : vector<4x128xf32> to vector<1x128xf32>
    %19 = vector.broadcast %17 : vector<10x1xf32> to vector<10x128xf32>
    %20 = vector.broadcast %18 : vector<1x128xf32> to vector<10x128xf32>
    %21 = arith.mulf %19, %20 : vector<10x128xf32>
    %22 = arith.addf %16, %21 : vector<10x128xf32>
    %23 = vector.extract_strided_slice %1 {offsets = [0, 3], sizes = [10, 1], strides = [1, 1]} : vector<10x4xf32> to vector<10x1xf32>
    %24 = vector.extract_strided_slice %0 {offsets = [3, 0], sizes = [1, 128], strides = [1, 1]} : vector<4x128xf32> to vector<1x128xf32>
    %25 = vector.broadcast %23 : vector<10x1xf32> to vector<10x128xf32>
    %26 = vector.broadcast %24 : vector<1x128xf32> to vector<10x128xf32>
    %27 = arith.mulf %25, %26 : vector<10x128xf32>
    %28 = arith.addf %22, %27 : vector<10x128xf32>
    %29 = arith.negf %28 : vector<10x128xf32>
    %30 = math.exp %29 : vector<10x128xf32>
    %cst = arith.constant 1.000000e+00 : f32
    %31 = vector.broadcast %cst : f32 to vector<10x128xf32>
    %32 = arith.addf %31, %30 : vector<10x128xf32>
    %33 = arith.divf %31, %32 : vector<10x128xf32>
    %c0_7 = arith.constant 0 : index
    %c0_8 = arith.constant 0 : index
    %34 = vector.load %arg5[%c0_7, %c0_8] : memref<2x1xf32, #tpu.memory_space<vmem>>, vector<2x1xf32>
    %35 = vector.extract_strided_slice %2 {offsets = [0, 0], sizes = [2, 1], strides = [1, 1]} : vector<2x10xf32> to vector<2x1xf32>
    %36 = vector.extract_strided_slice %33 {offsets = [0, 0], sizes = [1, 128], strides = [1, 1]} : vector<10x128xf32> to vector<1x128xf32>
    %37 = vector.broadcast %35 : vector<2x1xf32> to vector<2x128xf32>
    %38 = vector.broadcast %36 : vector<1x128xf32> to vector<2x128xf32>
    %39 = arith.mulf %37, %38 : vector<2x128xf32>
    %40 = vector.broadcast %34 : vector<2x1xf32> to vector<2x128xf32>
    %41 = arith.addf %40, %39 : vector<2x128xf32>
    %42 = vector.extract_strided_slice %2 {offsets = [0, 1], sizes = [2, 1], strides = [1, 1]} : vector<2x10xf32> to vector<2x1xf32>
    %43 = vector.extract_strided_slice %33 {offsets = [1, 0], sizes = [1, 128], strides = [1, 1]} : vector<10x128xf32> to vector<1x128xf32>
    %44 = vector.broadcast %42 : vector<2x1xf32> to vector<2x128xf32>
    %45 = vector.broadcast %43 : vector<1x128xf32> to vector<2x128xf32>
    %46 = arith.mulf %44, %45 : vector<2x128xf32>
    %47 = arith.addf %41, %46 : vector<2x128xf32>
    %48 = vector.extract_strided_slice %2 {offsets = [0, 2], sizes = [2, 1], strides = [1, 1]} : vector<2x10xf32> to vector<2x1xf32>
    %49 = vector.extract_strided_slice %33 {offsets = [2, 0], sizes = [1, 128], strides = [1, 1]} : vector<10x128xf32> to vector<1x128xf32>
    %50 = vector.broadcast %48 : vector<2x1xf32> to vector<2x128xf32>
    %51 = vector.broadcast %49 : vector<1x128xf32> to vector<2x128xf32>
    %52 = arith.mulf %50, %51 : vector<2x128xf32>
    %53 = arith.addf %47, %52 : vector<2x128xf32>
    %54 = vector.extract_strided_slice %2 {offsets = [0, 3], sizes = [2, 1], strides = [1, 1]} : vector<2x10xf32> to vector<2x1xf32>
    %55 = vector.extract_strided_slice %33 {offsets = [3, 0], sizes = [1, 128], strides = [1, 1]} : vector<10x128xf32> to vector<1x128xf32>
    %56 = vector.broadcast %54 : vector<2x1xf32> to vector<2x128xf32>
    %57 = vector.broadcast %55 : vector<1x128xf32> to vector<2x128xf32>
    %58 = arith.mulf %56, %57 : vector<2x128xf32>
    %59 = arith.addf %53, %58 : vector<2x128xf32>
    %60 = vector.extract_strided_slice %2 {offsets = [0, 4], sizes = [2, 1], strides = [1, 1]} : vector<2x10xf32> to vector<2x1xf32>
    %61 = vector.extract_strided_slice %33 {offsets = [4, 0], sizes = [1, 128], strides = [1, 1]} : vector<10x128xf32> to vector<1x128xf32>
    %62 = vector.broadcast %60 : vector<2x1xf32> to vector<2x128xf32>
    %63 = vector.broadcast %61 : vector<1x128xf32> to vector<2x128xf32>
    %64 = arith.mulf %62, %63 : vector<2x128xf32>
    %65 = arith.addf %59, %64 : vector<2x128xf32>
    %66 = vector.extract_strided_slice %2 {offsets = [0, 5], sizes = [2, 1], strides = [1, 1]} : vector<2x10xf32> to vector<2x1xf32>
    %67 = vector.extract_strided_slice %33 {offsets = [5, 0], sizes = [1, 128], strides = [1, 1]} : vector<10x128xf32> to vector<1x128xf32>
    %68 = vector.broadcast %66 : vector<2x1xf32> to vector<2x128xf32>
    %69 = vector.broadcast %67 : vector<1x128xf32> to vector<2x128xf32>
    %70 = arith.mulf %68, %69 : vector<2x128xf32>
    %71 = arith.addf %65, %70 : vector<2x128xf32>
    %72 = vector.extract_strided_slice %2 {offsets = [0, 6], sizes = [2, 1], strides = [1, 1]} : vector<2x10xf32> to vector<2x1xf32>
    %73 = vector.extract_strided_slice %33 {offsets = [6, 0], sizes = [1, 128], strides = [1, 1]} : vector<10x128xf32> to vector<1x128xf32>
    %74 = vector.broadcast %72 : vector<2x1xf32> to vector<2x128xf32>
    %75 = vector.broadcast %73 : vector<1x128xf32> to vector<2x128xf32>
    %76 = arith.mulf %74, %75 : vector<2x128xf32>
    %77 = arith.addf %71, %76 : vector<2x128xf32>
    %78 = vector.extract_strided_slice %2 {offsets = [0, 7], sizes = [2, 1], strides = [1, 1]} : vector<2x10xf32> to vector<2x1xf32>
    %79 = vector.extract_strided_slice %33 {offsets = [7, 0], sizes = [1, 128], strides = [1, 1]} : vector<10x128xf32> to vector<1x128xf32>
    %80 = vector.broadcast %78 : vector<2x1xf32> to vector<2x128xf32>
    %81 = vector.broadcast %79 : vector<1x128xf32> to vector<2x128xf32>
    %82 = arith.mulf %80, %81 : vector<2x128xf32>
    %83 = arith.addf %77, %82 : vector<2x128xf32>
    %84 = vector.extract_strided_slice %2 {offsets = [0, 8], sizes = [2, 1], strides = [1, 1]} : vector<2x10xf32> to vector<2x1xf32>
    %85 = vector.extract_strided_slice %33 {offsets = [8, 0], sizes = [1, 128], strides = [1, 1]} : vector<10x128xf32> to vector<1x128xf32>
    %86 = vector.broadcast %84 : vector<2x1xf32> to vector<2x128xf32>
    %87 = vector.broadcast %85 : vector<1x128xf32> to vector<2x128xf32>
    %88 = arith.mulf %86, %87 : vector<2x128xf32>
    %89 = arith.addf %83, %88 : vector<2x128xf32>
    %90 = vector.extract_strided_slice %2 {offsets = [0, 9], sizes = [2, 1], strides = [1, 1]} : vector<2x10xf32> to vector<2x1xf32>
    %91 = vector.extract_strided_slice %33 {offsets = [9, 0], sizes = [1, 128], strides = [1, 1]} : vector<10x128xf32> to vector<1x128xf32>
    %92 = vector.broadcast %90 : vector<2x1xf32> to vector<2x128xf32>
    %93 = vector.broadcast %91 : vector<1x128xf32> to vector<2x128xf32>
    %94 = arith.mulf %92, %93 : vector<2x128xf32>
    %95 = arith.addf %89, %94 : vector<2x128xf32>
    %c0_9 = arith.constant 0 : index
    %c0_10 = arith.constant 0 : index
    %96 = vector.load %arg6[%c0_9, %c0_10] : memref<2x128xf32, #tpu.memory_space<vmem>>, vector<2x128xf32>
    tpu.vector_store %arg6[%c0_9, %c0_10], %95 {strides = array<i32>} : memref<2x128xf32, #tpu.memory_space<vmem>>, vector<2x128xf32>,
    return
  }
  func.func @transform_0(%arg0: i32) -> (i32, i32) {
    %c0_i32 = arith.constant 0 : i32
    %c0_i32_0 = arith.constant 0 : i32
    return %c0_i32, %arg0 : i32, i32
  }
  func.func @transform_1(%arg0: i32) -> (i32, i32) {
    %c0_i32 = arith.constant 0 : i32
    %c0_i32_0 = arith.constant 0 : i32
    %c0_i32_1 = arith.constant 0 : i32
    return %c0_i32, %c0_i32_0 : i32, i32
  }
  func.func @transform_2(%arg0: i32) -> (i32, i32) {
    %c0_i32 = arith.constant 0 : i32
    %c0_i32_0 = arith.constant 0 : i32
    %c0_i32_1 = arith.constant 0 : i32
    return %c0_i32, %c0_i32_0 : i32, i32
  }
  func.func @transform_3(%arg0: i32) -> (i32, i32) {
    %c0_i32 = arith.constant 0 : i32
    %c0_i32_0 = arith.constant 0 : i32
    %c0_i32_1 = arith.constant 0 : i32
    return %c0_i32, %c0_i32_0 : i32, i32
  }
  func.func @transform_4(%arg0: i32) -> (i32, i32) {
    %c0_i32 = arith.constant 0 : i32
    %c0_i32_0 = arith.constant 0 : i32
    %c0_i32_1 = arith.constant 0 : i32
    return %c0_i32, %c0_i32_0 : i32, i32
  }
  func.func @transform_5(%arg0: i32) -> (i32, i32) {
    %c0_i32 = arith.constant 0 : i32
    %c0_i32_0 = arith.constant 0 : i32
    return %c0_i32, %arg0 : i32, i32
  }
}

</mosaic_0001>

<llo_original>
// kernel: tpu_custom_call.1
$region0: #{tpu_custom_call.1}
  #allocation0 [shape = 'u32[]', space=smem, size = 0x4, offset = 0x4, fixed_abs, tag = 'smem constant byte address 0x4 - core index']
  #allocation1 [shape = 'u32[144,128]{1,0:T(1,128)}', space=vmem, size = 0x12000, scoped, tag = 'internal scratch']
  %s0 = inlined_call_operand.vmem [shape: f32[4,128], index: 0, kind: input, shape index: {}]
  %s1 = inlined_call_operand.vmem [shape: f32[10,4], index: 1, kind: input, shape index: {}]
  %s2 = inlined_call_operand.vmem [shape: f32[10,1], index: 2, kind: input, shape index: {}]
  %s3 = inlined_call_operand.vmem [shape: f32[2,10], index: 3, kind: input, shape index: {}]
  %s4 = inlined_call_operand.vmem [shape: f32[2,1], index: 4, kind: input, shape index: {}]
  %s5 = inlined_call_operand.hbm [shape: f32[2,128], index: 5, kind: output, shape index: {}]
  %s6 = sld [smem:[#allocation0]]
  $region30: #{tpu_custom_call.1} parent=0
    _
  %s8 = ssub.s32 1, %s6
  %s9 = scalar_select 0, %s8, %s6
  $region1: #{tpu_custom_call.1} parent=0
    #allocation2 [shape = 'u8[1024]{0}', space=vmem, size = 0x400, scoped, tag = 'output window, operand 0, single buffered']
    #allocation3 [shape = 's32[1]{0}', space=sflag, size = 0x4, scoped, tag = 'scoped memory for tpu_custom_call.1']
    %10 = vsyncpa [#allocation3], 0
    // Predicated region
    $region2: #{tpu_custom_call.1} parent=1 // pred_check
      _
    $region3: #{tpu_custom_call.1} parent=1 // pred_check_branch
      %12 = sbr.rel (0) target = $region5
    $region4: #{tpu_custom_call.1} parent=1 // pred_region
      _
    $region5: #{tpu_custom_call.1} parent=1 // pred_fallthru
      _
    // Predicated region
    $region6: #{tpu_custom_call.1} parent=1 // pred_check
      _
    $region7: #{tpu_custom_call.1} parent=1 // pred_check_branch
      %14 = sbr.rel (0) target = $region9
    $region8: #{tpu_custom_call.1} parent=1 // pred_region
      _
    $region9: #{tpu_custom_call.1} parent=1 // pred_fallthru
      _
    // Predicated region
    $region10: #{tpu_custom_call.1} parent=1 // pred_check
      _
    $region11: #{tpu_custom_call.1} parent=1 // pred_check_branch
      %16 = sbr.rel (0) target = $region13
    $region12: #{tpu_custom_call.1} parent=1 // pred_region
      _
    $region13: #{tpu_custom_call.1} parent=1 // pred_fallthru
      _
    // Predicated region
    $region14: #{tpu_custom_call.1} parent=1 // pred_check
      _
    $region15: #{tpu_custom_call.1} parent=1 // pred_check_branch
      %18 = sbr.rel (0) target = $region17
    $region16: #{tpu_custom_call.1} parent=1 // pred_region
      _
    $region17: #{tpu_custom_call.1} parent=1 // pred_fallthru
      _
    // Predicated region
    $region18: #{tpu_custom_call.1} parent=1 // pred_check
      _
    $region19: #{tpu_custom_call.1} parent=1 // pred_check_branch
      %20 = sbr.rel (0) target = $region21
    $region20: #{tpu_custom_call.1} parent=1 // pred_region
      _
    $region21: #{tpu_custom_call.1} parent=1 // pred_fallthru
      _
    %v21 = vld [vmem:[%s0] sm:$0xf]
    %v22 = vld [vmem:[%s1] sm:$0xff]
    %v23 = vld [vmem:[%s1 + $0x8] sm:$0x3]
    %v24 = vld [vmem:[%s3] sm:$0x3]
    %v25 = vld [vmem:[%s2] sm:$0xff]
    %v26 = vld [vmem:[%s2 + $0x8] sm:$0x3]
    %28 = vset.pattern.permute.xlu0 0
    %29 = vperm.xlu0 %28, %v22
    %v30 = vpop.permute.xlu0 %29
    %33 = vset.pattern.permute.xlu0 0
    %34 = vperm.xlu0 %33, %v23
    %v35 = vpop.permute.xlu0 %34
    %v37 = vlaneseq
    %v38 = vshrl.u32 %v37, 7
    %v39 = vsub.s32 0, %v38
    %v40 = vrot.slane %v21, %v39
    %v41 = vmul.f32 %v30, %v40
    %v42 = vmul.f32 %v35, %v40
    %44 = vset.pattern.permute.xlu0 0
    %45 = vperm.xlu0 %44, %v25
    %v46 = vpop.permute.xlu0 %45
    %49 = vset.pattern.permute.xlu0 0
    %50 = vperm.xlu0 %49, %v26
    %v51 = vpop.permute.xlu0 %50
    %v53 = vadd.f32 %v46, %v41
    %v54 = vadd.f32 %v51, %v42
    %55 = vset.pattern.permute.xlu0 1
    %56 = vperm.xlu0 %55, %v22
    %v57 = vpop.permute.xlu0 %56
    %59 = vset.pattern.permute.xlu0 1
    %60 = vperm.xlu0 %59, %v23
    %v61 = vpop.permute.xlu0 %60
    %v63 = vlaneseq
    %v64 = vshrl.u32 %v63, 7
    %v65 = vsub.s32 1, %v64
    %v66 = vrot.slane %v21, %v65
    %v67 = vmul.f32 %v57, %v66
    %v68 = vmul.f32 %v61, %v66
    %v69 = vadd.f32 %v53, %v67
    %v70 = vadd.f32 %v54, %v68
    %71 = vset.pattern.permute.xlu0 2
    %72 = vperm.xlu0 %71, %v22
    %v73 = vpop.permute.xlu0 %72
    %75 = vset.pattern.permute.xlu0 2
    %76 = vperm.xlu0 %75, %v23
    %v77 = vpop.permute.xlu0 %76
    %v79 = vlaneseq
    %v80 = vshrl.u32 %v79, 7
    %v81 = vsub.s32 2, %v80
    %v82 = vrot.slane %v21, %v81
    %v83 = vmul.f32 %v73, %v82
    %v84 = vmul.f32 %v77, %v82
    %v85 = vadd.f32 %v69, %v83
    %v86 = vadd.f32 %v70, %v84
    %87 = vset.pattern.permute.xlu0 3
    %88 = vperm.xlu0 %87, %v22
    %v89 = vpop.permute.xlu0 %88
    %91 = vset.pattern.permute.xlu0 3
    %92 = vperm.xlu0 %91, %v23
    %v93 = vpop.permute.xlu0 %92
    %v95 = vlaneseq
    %v96 = vshrl.u32 %v95, 7
    %v97 = vsub.s32 3, %v96
    %v98 = vrot.slane %v21, %v97
    %v99 = vmul.f32 %v89, %v98
    %v100 = vmul.f32 %v93, %v98
    %v101 = vadd.f32 %v85, %v99
    %v102 = vadd.f32 %v86, %v100
    %v103 = vxor.u32 %v101, 2147483648
    %v104 = vxor.u32 %v102, 2147483648
    %v105 = vmul.f32 %v103, 1.442695
    %v106 = vpow.pop %v105
    %v107 = vmul.f32 %v104, 1.442695
    %v108 = vpow.pop %v107
    %v109 = vadd.f32 %v106, 1.0
    %v110 = vadd.f32 %v108, 1.0
    %v111 = vrcp.pop %v109
    %v112 = vmul.f32 1.0, %v111
    %v113 = vrcp.pop %v110
    %v114 = vmul.f32 1.0, %v113
    %v115 = vld [vmem:[%s4] sm:$0x3]
    %117 = vset.pattern.permute.xlu0 0
    %118 = vperm.xlu0 %117, %v24
    %v119 = vpop.permute.xlu0 %118
    %v121 = vlaneseq
    %v122 = vshrl.u32 %v121, 7
    %v123 = vsub.s32 0, %v122
    %v124 = vrot.slane %v112, %v123
    %v125 = vmul.f32 %v119, %v124
    %127 = vset.pattern.permute.xlu0 0
    %128 = vperm.xlu0 %127, %v115
    %v129 = vpop.permute.xlu0 %128
    %v131 = vadd.f32 %v129, %v125
    %132 = vset.pattern.permute.xlu0 1
    %133 = vperm.xlu0 %132, %v24
    %v134 = vpop.permute.xlu0 %133
    %v136 = vlaneseq
    %v137 = vshrl.u32 %v136, 7
    %v138 = vsub.s32 1, %v137
    %v139 = vrot.slane %v112, %v138
    %v140 = vmul.f32 %v134, %v139
    %v141 = vadd.f32 %v131, %v140
    %142 = vset.pattern.permute.xlu0 2
    %143 = vperm.xlu0 %142, %v24
    %v144 = vpop.permute.xlu0 %143
    %v146 = vlaneseq
    %v147 = vshrl.u32 %v146, 7
    %v148 = vsub.s32 2, %v147
    %v149 = vrot.slane %v112, %v148
    %v150 = vmul.f32 %v144, %v149
    %v151 = vadd.f32 %v141, %v150
    %152 = vset.pattern.permute.xlu0 3
    %153 = vperm.xlu0 %152, %v24
    %v154 = vpop.permute.xlu0 %153
    %v156 = vlaneseq
    %v157 = vshrl.u32 %v156, 7
    %v158 = vsub.s32 3, %v157
    %v159 = vrot.slane %v112, %v158
    %v160 = vmul.f32 %v154, %v159
    %v161 = vadd.f32 %v151, %v160
    %162 = vset.pattern.permute.xlu0 4
    %163 = vperm.xlu0 %162, %v24
    %v164 = vpop.permute.xlu0 %163
    %v166 = vlaneseq
    %v167 = vshrl.u32 %v166, 7
    %v168 = vsub.s32 4, %v167
    %v169 = vrot.slane %v112, %v168
    %v170 = vmul.f32 %v164, %v169
    %v171 = vadd.f32 %v161, %v170
    %172 = vset.pattern.permute.xlu0 5
    %173 = vperm.xlu0 %172, %v24
    %v174 = vpop.permute.xlu0 %173
    %v176 = vlaneseq
    %v177 = vshrl.u32 %v176, 7
    %v178 = vsub.s32 5, %v177
    %v179 = vrot.slane %v112, %v178
    %v180 = vmul.f32 %v174, %v179
    %v181 = vadd.f32 %v171, %v180
    %182 = vset.pattern.permute.xlu0 6
    %183 = vperm.xlu0 %182, %v24
    %v184 = vpop.permute.xlu0 %183
    %v186 = vlaneseq
    %v187 = vshrl.u32 %v186, 7
    %v188 = vsub.s32 6, %v187
    %v189 = vrot.slane %v112, %v188
    %v190 = vmul.f32 %v184, %v189
    %v191 = vadd.f32 %v181, %v190
    %192 = vset.pattern.permute.xlu0 7
    %193 = vperm.xlu0 %192, %v24
    %v194 = vpop.permute.xlu0 %193
    %v196 = vlaneseq
    %v197 = vshrl.u32 %v196, 7
    %v198 = vsub.s32 7, %v197
    %v199 = vrot.slane %v112, %v198
    %v200 = vmul.f32 %v194, %v199
    %v201 = vadd.f32 %v191, %v200
    %202 = vset.pattern.permute.xlu0 8
    %203 = vperm.xlu0 %202, %v24
    %v204 = vpop.permute.xlu0 %203
    %v206 = vlaneseq
    %v207 = vshrl.u32 %v206, 7
    %v208 = vsub.s32 0, %v207
    %v209 = vrot.slane %v114, %v208
    %v210 = vmul.f32 %v204, %v209
    %v211 = vadd.f32 %v201, %v210
    %212 = vset.pattern.permute.xlu0 9
    %213 = vperm.xlu0 %212, %v24
    %v214 = vpop.permute.xlu0 %213
    %v216 = vlaneseq
    %v217 = vshrl.u32 %v216, 7
    %v218 = vsub.s32 1, %v217
    %v219 = vrot.slane %v114, %v218
    %v220 = vmul.f32 %v214, %v219
    %v221 = vadd.f32 %v211, %v220
    %222 = vst [vmem:[#allocation2] sm:$0x3] %v221
    // Predicated region
    $region22: #{tpu_custom_call.1} parent=1 // pred_check
      _
    $region23: #{tpu_custom_call.1} parent=1 // pred_check_branch
      %224 = sbr.rel (0) target = $region25
    $region24: #{tpu_custom_call.1} parent=1 // pred_region
      %s226 = ssub.s32 32, 32
      %227 = vsyncadd [#allocation3], %s226
      %s229 = sshll.u32 [#allocation2], 4
      %s230 = int_to_ptr.vmem [resolvable:$true] %s229
      %232 = dma.vmem_to_hbm [thread:$0]  %s230, 32, %s5, [#allocation3]
    $region25: #{tpu_custom_call.1} parent=1 // pred_fallthru
      _
    // Predicated region
    $region26: #{tpu_custom_call.1} parent=1 // pred_check
      _
    $region27: #{tpu_custom_call.1} parent=1 // pred_check_branch
      %234 = sbr.rel (0) target = $region29
    $region28: #{tpu_custom_call.1} parent=1 // pred_region
      %235 = dma.done [#allocation3], 32
    $region29: #{tpu_custom_call.1} parent=1 // pred_fallthru
      _
    %236 = vsyncpa [#allocation3], 1

</llo_original>
